<compile_context>
chip_gen: v7x
topology: tpu7x:2x2x1
jax: 0.10.0
libtpu: 0.0.40
codegen_flags: <defaults>
</compile_context>

<pallas_src>
import functools
import random

import jax
import jax.numpy as jnp
from jax import lax
from jax.experimental import pallas as pl
from jax.experimental.pallas import tpu as pltpu

_LANE = 128      # lane width: last dims padded to a multiple of this
_SUBLANE = 8     # sublane width: batch rows padded to a multiple of this


def _round_up(v, m):
    return ((v + m - 1) // m) * m


def _choose_tm(n_rows):
    """Batch tile size: minimize padding waste and give >=2 grid steps when the
    batch is big enough (so both v7x TensorCores get work via 'parallel')."""
    m8 = _round_up(n_rows, _SUBLANE)
    if m8 <= 2 * _SUBLANE:
        return m8                                        # tiny batch: one tile
    if m8 <= 512:
        return _round_up((m8 + 1) // 2, _SUBLANE)        # split in two, minimal padding
    best_tm, best_pad = 256, None
    for tm in (256, 128):                                # large batch: least wasted rows
        pad = _round_up(m8, tm) - n_rows
        if best_pad is None or pad < best_pad:
            best_tm, best_pad = tm, pad
    return best_tm


def _vmem_budget_bytes(tm, d_in_p, h_p, d_out_p):
    """Explicit scoped-VMEM budget (conservatively assume double buffering)."""
    w_bytes = (d_in_p * h_p + h_p * h_p + h_p * d_out_p) * 2    # bf16 weights
    b_bytes = (2 * h_p + d_out_p) * 4                            # f32 biases
    io_bytes = tm * (d_in_p + d_out_p) * 4                       # f32 x / out tiles
    est = 2 * (w_bytes + b_bytes + io_bytes) + (2 << 20)         # + compiler headroom
    # Floor at v5e's 16 MiB scoped default; cap well under v7x's 64 MiB physical.
    # (For H >= ~4K, W_middle should be tiled with an inner pipeline over H
    #  instead of held resident — not needed at these shapes.)
    return int(min(max(est, 16 * 1024 * 1024), 48 * 1024 * 1024))


def _fused_mlp_kernel(n_mid_ref,                       # SMEM scalar prefetch: [n_middle]
                      x_ref, w1_ref, b1_ref,           # VMEM tiles
                      wm_ref, bm_ref, wl_ref, bl_ref,
                      o_ref):                          # output tile
    """Whole dynamic-depth MLP on one VMEM-resident batch tile.

    Matmul operands are bf16 (native single MXU pass); accumulation and all
    elementwise math are f32.  The running activation is carried through the
    middle-layer fori_loop as a value (vregs), never round-tripped through VMEM.
    The trip count is a runtime scalar read from SMEM (depth is data, not a
    trace constant -> no recompile per sampled depth).
    """
    tm, h_p = x_ref.shape[0], w1_ref.shape[1]

    # First layer: h = relu(x @ W1 + b1)
    h = jnp.dot(x_ref[...].astype(jnp.bfloat16), w1_ref[...],
                preferred_element_type=jnp.float32)
    h = jnp.maximum(h + b1_ref[...], 0.0).astype(jnp.bfloat16)

    # Middle bias: load + broadcast once, OUTSIDE the loop (no CSE of broadcasts).
    bm = jnp.broadcast_to(bm_ref[...], (tm, h_p))

    # Shared middle layers; data-dependent trip count.
    def body(_, h_carry):
        hm = jnp.dot(h_carry, wm_ref[...], preferred_element_type=jnp.float32)
        return jnp.maximum(hm + bm, 0.0).astype(jnp.bfloat16)

    h = lax.fori_loop(0, n_mid_ref[0], body, h)

    # Last layer: y = h @ Wl + bl (no ReLU), output in f32.
    y = jnp.dot(h, wl_ref[...], preferred_element_type=jnp.float32)
    o_ref[...] = (y + bl_ref[...]).astype(o_ref.dtype)


@functools.partial(jax.jit, static_argnames=("tm", "est_depth"))
def _fused_mlp(n_middle, x_p, w1, b1, wm, bm, wl, bl, *, tm, est_depth):
    """x_p: (M_p, D_in_p) padded f32 batch; weights pre-transposed (in, out),
    zero-padded and cast to bf16 at init; biases padded f32."""
    m_p, d_in_p = x_p.shape
    h_p = w1.shape[1]
    d_out_p = wl.shape[1]
    grid = (m_p // tm,)

    const = lambda i, nm: (0, 0)   # weights/biases: VMEM-resident, fetched once

    flops = 2 * m_p * (d_in_p * h_p + est_depth * h_p * h_p + h_p * d_out_p)
    bytes_accessed = (x_p.size * 4 + m_p * d_out_p * 4
                      + (w1.size + wm.size + wl.size) * 2
                      + (b1.size + bm.size + bl.size) * 4)

    return pl.pallas_call(
        _fused_mlp_kernel,
        out_shape=jax.ShapeDtypeStruct((m_p, d_out_p), jnp.float32),
        grid_spec=pltpu.PrefetchScalarGridSpec(
            num_scalar_prefetch=1,
            grid=grid,
            in_specs=[
                pl.BlockSpec((tm, d_in_p), lambda i, nm: (i, 0)),   # x tile (pipelined)
                pl.BlockSpec((d_in_p, h_p), const),                 # W1       (bf16)
                pl.BlockSpec((1, h_p), const),                      # b1       (f32)
                pl.BlockSpec((h_p, h_p), const),                    # W_middle (bf16, shared)
                pl.BlockSpec((1, h_p), const),                      # b_middle (f32)
                pl.BlockSpec((h_p, d_out_p), const),                # W_last   (bf16)
                pl.BlockSpec((1, d_out_p), const),                  # b_last   (f32)
            ],
            out_specs=pl.BlockSpec((tm, d_out_p), lambda i, nm: (i, 0)),
        ),
        compiler_params=pltpu.CompilerParams(
            dimension_semantics=("parallel",),
            vmem_limit_bytes=_vmem_budget_bytes(tm, d_in_p, h_p, d_out_p),
        ),
        cost_estimate=pl.CostEstimate(
            flops=int(flops), transcendentals=0, bytes_accessed=int(bytes_accessed)),
    )(n_middle, x_p, w1, b1, wm, bm, wl, bl)


class SomeLayerNetPallas:
    """Parameter container + forward that mirrors the PyTorch module."""

    def __init__(self, D_in, H, D_out, key):
        self.D_in, self.H, self.D_out = D_in, H, D_out
        self.D_in_p = _round_up(D_in, _LANE)
        self.H_p = _round_up(H, _LANE)
        self.D_out_p = _round_up(D_out, _LANE)

        k = jax.random.split(key, 6)

        # Deterministic, PyTorch-Linear-like init: U(-1/sqrt(fan_in), +1/sqrt(fan_in)).
        def init(kw, kb, fan_in, fan_out):
            bound = 1.0 / (fan_in ** 0.5)
            w = jax.random.uniform(kw, (fan_out, fan_in), jnp.float32, -bound, bound)
            b = jax.random.uniform(kb, (fan_out,), jnp.float32, -bound, bound)
            return w, b

        # PyTorch-style (out, in) f32 weights kept for the f32 reference.
        self.w_first, self.b_first = init(k[0], k[1], D_in, H)
        self.w_middle, self.b_middle = init(k[2], k[3], H, H)
        self.w_last, self.b_last = init(k[4], k[5], H, D_out)

        # Kernel-side params: transposed to (in, out), zero-padded to lane-dense
        # shapes, weights cast to bf16 ONCE at init.  Zero padding is exact:
        # padded input features multiply zero activations, padded output features
        # get zero weight columns + zero bias -> stay zero through ReLU.
        def pack(w, b, in_p, out_p):
            w_t = jnp.zeros((in_p, out_p), jnp.float32)
            w_t = w_t.at[: w.shape[1], : w.shape[0]].set(jnp.transpose(w))
            b_p = jnp.zeros((1, out_p), jnp.float32).at[0, : b.shape[0]].set(b)
            return w_t.astype(jnp.bfloat16), b_p

        self.w1_k, self.b1_k = pack(self.w_first, self.b_first, self.D_in_p, self.H_p)
        self.wm_k, self.bm_k = pack(self.w_middle, self.b_middle, self.H_p, self.H_p)
        self.wl_k, self.bl_k = pack(self.w_last, self.b_last, self.H_p, self.D_out_p)

        self.last_n_middle = None

    def forward(self, x, n):
        # Per-call dynamic depth sampled on the host like the PyTorch module,
        # passed to the kernel as a runtime scalar (no recompile per depth).
        n_middle = random.randint(0, n)
        self.last_n_middle = n_middle
        est_depth = max(1, (n + 1) // 2)      # mean depth, only used for the cost estimate
        return self._apply(x, n_middle, est_depth)

    def _apply(self, x, n_middle, est_depth):
        N = x.shape[0]
        tm = _choose_tm(N)
        m_p = _round_up(N, tm)
        x_p = jnp.zeros((m_p, self.D_in_p), jnp.float32).at[:N, : self.D_in].set(x)
        n_arr = jnp.asarray([n_middle], dtype=jnp.int32)
        y_p = _fused_mlp(n_arr, x_p, self.w1_k, self.b1_k, self.wm_k, self.bm_k,
                         self.wl_k, self.bl_k, tm=tm, est_depth=est_depth)
        return y_p[:N, : self.D_out]


def _reference_bf16(net, x, n_middle):
    """Numerics-matched pure-JAX reference: same packed bf16 weights, bf16 matmul
    operands, f32 accumulate / bias / ReLU — mirrors the kernel exactly."""
    N = x.shape[0]
    x_p = jnp.zeros((N, net.D_in_p), jnp.float32).at[:, : net.D_in].set(x)
    mm = lambda a, w: jnp.dot(a.astype(jnp.bfloat16), w,
                              preferred_element_type=jnp.float32)
    h = jnp.maximum(mm(x_p, net.w1_k) + net.b1_k, 0.0)
    for _ in range(n_middle):
        h = jnp.maximum(mm(h, net.wm_k) + net.bm_k, 0.0)
    return (mm(h, net.wl_k) + net.bl_k)[:, : net.D_out]


def _reference_f32(net, x, n_middle):
    h = jnp.maximum(x @ net.w_first.T + net.b_first, 0.0)
    for _ in range(n_middle):
        h = jnp.maximum(h @ net.w_middle.T + net.b_middle, 0.0)
    return h @ net.w_last.T + net.b_last


if __name__ == "__main__":
    # Deterministic dynamic depth (the PyTorch module uses un-seeded random.randint).
    random.seed(0)

    N, D_in, H, D_out = 2, 32, 32, 16
    n = 3

    key = jax.random.PRNGKey(0)
    key_x, key_params = jax.random.split(key)
    x = jax.random.normal(key_x, (N, D_in), dtype=jnp.float32)

    net = SomeLayerNetPallas(D_in, H, D_out, key_params)

    # First call.
    y = jax.block_until_ready(net.forward(x, n))
    assert y.shape == (N, D_out) and y.dtype == jnp.float32
    # Exact-numerics check against a bf16-matched reference, plus a loose sanity
    # check against the full-f32 reference (bf16 matmul operands => small error).
    assert jnp.allclose(y, _reference_bf16(net, x, net.last_n_middle),
                        atol=1e-3, rtol=1e-3)
    assert jnp.allclose(y, _reference_f32(net, x, net.last_n_middle),
                        atol=5e-2, rtol=5e-2)

    # Second call with a (possibly) different sampled depth reuses the SAME
    # compiled kernel — depth is runtime data driving the in-kernel fori_loop.
    y2 = jax.block_until_ready(net.forward(x, n))
    assert jnp.allclose(y2, _reference_bf16(net, x, net.last_n_middle),
                        atol=1e-3, rtol=1e-3)

    print("KERNEL_OK")
</pallas_src>

<mosaic_0001>
module attributes {stable_mosaic.version = 11 : i64} {
  func.func @_fused_mlp_kernel(%arg0: i32, %arg1: memref<1xi32, #tpu.memory_space<smem>>, %arg2: memref<8x128xf32, #tpu.memory_space<vmem>>, %arg3: memref<128x128xbf16, #tpu.memory_space<vmem>>, %arg4: memref<1x128xf32, #tpu.memory_space<vmem>>, %arg5: memref<128x128xbf16, #tpu.memory_space<vmem>>, %arg6: memref<1x128xf32, #tpu.memory_space<vmem>>, %arg7: memref<128x128xbf16, #tpu.memory_space<vmem>>, %arg8: memref<1x128xf32, #tpu.memory_space<vmem>>, %arg9: memref<8x128xf32, #tpu.memory_space<vmem>>) attributes {dimension_semantics = [#tpu.dimension_semantics<parallel>], iteration_bounds = array<i64: 1>, scalar_prefetch = 1 : i64, scratch_operands = 0 : i64, tpu.core_type = #tpu.core_type<tc>, window_params = [{transform_indices = @transform_0, window_bounds = array<i64: 8, 128>}, {pipeline_mode = #tpu.pipeline_mode<synchronous>, transform_indices = @transform_1, window_bounds = array<i64: 128, 128>}, {pipeline_mode = #tpu.pipeline_mode<synchronous>, transform_indices = @transform_2, window_bounds = array<i64: 1, 128>}, {pipeline_mode = #tpu.pipeline_mode<synchronous>, transform_indices = @transform_3, window_bounds = array<i64: 128, 128>}, {pipeline_mode = #tpu.pipeline_mode<synchronous>, transform_indices = @transform_4, window_bounds = array<i64: 1, 128>}, {pipeline_mode = #tpu.pipeline_mode<synchronous>, transform_indices = @transform_5, window_bounds = array<i64: 128, 128>}, {pipeline_mode = #tpu.pipeline_mode<synchronous>, transform_indices = @transform_6, window_bounds = array<i64: 1, 128>}, {transform_indices = @transform_7, window_bounds = array<i64: 8, 128>}]} {
    %c0 = arith.constant 0 : index
    %c0_0 = arith.constant 0 : index
    %0 = vector.load %arg2[%c0, %c0_0] : memref<8x128xf32, #tpu.memory_space<vmem>>, vector<8x128xf32>
    %1 = arith.truncf %0 : vector<8x128xf32> to vector<8x128xbf16>
    %c0_1 = arith.constant 0 : index
    %c0_2 = arith.constant 0 : index
    %2 = vector.load %arg3[%c0_1, %c0_2] : memref<128x128xbf16, #tpu.memory_space<vmem>>, vector<128x128xbf16>
    %cst = arith.constant dense<0.000000e+00> : vector<8x128xf32>
    %3 = tpu.matmul %1, %2, %cst {dimension_numbers = #tpu.dot_dimension_numbers<[1], [0], [0], [1], [0, 0, 1, 1], [], []>} : vector<8x128xbf16>, vector<128x128xbf16>, vector<8x128xf32> -> vector<8x128xf32>
    %c0_3 = arith.constant 0 : index
    %c0_4 = arith.constant 0 : index
    %4 = vector.load %arg4[%c0_3, %c0_4] : memref<1x128xf32, #tpu.memory_space<vmem>>, vector<1x128xf32>
    %5 = vector.broadcast %4 : vector<1x128xf32> to vector<8x128xf32>
    %6 = arith.addf %3, %5 : vector<8x128xf32>
    %cst_5 = arith.constant 0.000000e+00 : f32
    %7 = vector.broadcast %cst_5 : f32 to vector<8x128xf32>
    %8 = arith.maximumf %6, %7 : vector<8x128xf32>
    %9 = arith.truncf %8 : vector<8x128xf32> to vector<8x128xbf16>
    %c0_6 = arith.constant 0 : index
    %c0_7 = arith.constant 0 : index
    %10 = vector.load %arg6[%c0_6, %c0_7] : memref<1x128xf32, #tpu.memory_space<vmem>>, vector<1x128xf32>
    %11 = vector.shape_cast %10 : vector<1x128xf32> to vector<1x128xf32>
    %12 = vector.broadcast %11 : vector<1x128xf32> to vector<8x128xf32>
    %c0_8 = arith.constant 0 : index
    %13 = memref.load %arg1[%c0_8] : memref<1xi32, #tpu.memory_space<smem>>
    %c0_i32 = arith.constant 0 : i32
    %14 = arith.subi %13, %c0_i32 : i32
    %15 = arith.addi %c0_i32, %14 : i32
    %c1_i32 = arith.constant 1 : i32
    %16 = scf.for %arg10 = %c0_i32 to %15 step %c1_i32 iter_args(%arg11 = %9) -> (vector<8x128xbf16>)  : i32 {
      %c0_16 = arith.constant 0 : index
      %c0_17 = arith.constant 0 : index
      %23 = vector.load %arg5[%c0_16, %c0_17] : memref<128x128xbf16, #tpu.memory_space<vmem>>, vector<128x128xbf16>
      %cst_18 = arith.constant dense<0.000000e+00> : vector<8x128xf32>
      %24 = tpu.matmul %arg11, %23, %cst_18 {dimension_numbers = #tpu.dot_dimension_numbers<[1], [0], [0], [1], [0, 0, 1, 1], [], []>} : vector<8x128xbf16>, vector<128x128xbf16>, vector<8x128xf32> -> vector<8x128xf32>
      %25 = arith.addf %24, %12 : vector<8x128xf32>
      %cst_19 = arith.constant 0.000000e+00 : f32
      %26 = vector.broadcast %cst_19 : f32 to vector<8x128xf32>
      %27 = arith.maximumf %25, %26 : vector<8x128xf32>
      %28 = arith.truncf %27 : vector<8x128xf32> to vector<8x128xbf16>
      scf.yield %28 : vector<8x128xbf16>
    }
    %c0_9 = arith.constant 0 : index
    %c0_10 = arith.constant 0 : index
    %17 = vector.load %arg7[%c0_9, %c0_10] : memref<128x128xbf16, #tpu.memory_space<vmem>>, vector<128x128xbf16>
    %cst_11 = arith.constant dense<0.000000e+00> : vector<8x128xf32>
    %18 = tpu.matmul %16, %17, %cst_11 {dimension_numbers = #tpu.dot_dimension_numbers<[1], [0], [0], [1], [0, 0, 1, 1], [], []>} : vector<8x128xbf16>, vector<128x128xbf16>, vector<8x128xf32> -> vector<8x128xf32>
    %c0_12 = arith.constant 0 : index
    %c0_13 = arith.constant 0 : index
    %19 = vector.load %arg8[%c0_12, %c0_13] : memref<1x128xf32, #tpu.memory_space<vmem>>, vector<1x128xf32>
    %20 = vector.broadcast %19 : vector<1x128xf32> to vector<8x128xf32>
    %21 = arith.addf %18, %20 : vector<8x128xf32>
    %c0_14 = arith.constant 0 : index
    %c0_15 = arith.constant 0 : index
    %22 = vector.load %arg9[%c0_14, %c0_15] : memref<8x128xf32, #tpu.memory_space<vmem>>, vector<8x128xf32>
    tpu.vector_store %arg9[%c0_14, %c0_15], %21 {strides = array<i32>} : memref<8x128xf32, #tpu.memory_space<vmem>>, vector<8x128xf32>,
    return
  }
  func.func @transform_0(%arg0: i32, %arg1: memref<1xi32, #tpu.memory_space<smem>>) -> (i32, i32) {
    %c0_i32 = arith.constant 0 : i32
    %c0_i32_0 = arith.constant 0 : i32
    return %arg0, %c0_i32 : i32, i32
  }
  func.func @transform_1(%arg0: i32, %arg1: memref<1xi32, #tpu.memory_space<smem>>) -> (i32, i32) {
    %c0_i32 = arith.constant 0 : i32
    %c0_i32_0 = arith.constant 0 : i32
    %c0_i32_1 = arith.constant 0 : i32
    return %c0_i32, %c0_i32_0 : i32, i32
  }
  func.func @transform_2(%arg0: i32, %arg1: memref<1xi32, #tpu.memory_space<smem>>) -> (i32, i32) {
    %c0_i32 = arith.constant 0 : i32
    %c0_i32_0 = arith.constant 0 : i32
    %c0_i32_1 = arith.constant 0 : i32
    return %c0_i32, %c0_i32_0 : i32, i32
  }
  func.func @transform_3(%arg0: i32, %arg1: memref<1xi32, #tpu.memory_space<smem>>) -> (i32, i32) {
    %c0_i32 = arith.constant 0 : i32
    %c0_i32_0 = arith.constant 0 : i32
    %c0_i32_1 = arith.constant 0 : i32
    return %c0_i32, %c0_i32_0 : i32, i32
  }
  func.func @transform_4(%arg0: i32, %arg1: memref<1xi32, #tpu.memory_space<smem>>) -> (i32, i32) {
    %c0_i32 = arith.constant 0 : i32
    %c0_i32_0 = arith.constant 0 : i32
    %c0_i32_1 = arith.constant 0 : i32
    return %c0_i32, %c0_i32_0 : i32, i32
  }
  func.func @transform_5(%arg0: i32, %arg1: memref<1xi32, #tpu.memory_space<smem>>) -> (i32, i32) {
    %c0_i32 = arith.constant 0 : i32
    %c0_i32_0 = arith.constant 0 : i32
    %c0_i32_1 = arith.constant 0 : i32
    return %c0_i32, %c0_i32_0 : i32, i32
  }
  func.func @transform_6(%arg0: i32, %arg1: memref<1xi32, #tpu.memory_space<smem>>) -> (i32, i32) {
    %c0_i32 = arith.constant 0 : i32
    %c0_i32_0 = arith.constant 0 : i32
    %c0_i32_1 = arith.constant 0 : i32
    return %c0_i32, %c0_i32_0 : i32, i32
  }
  func.func @transform_7(%arg0: i32, %arg1: memref<1xi32, #tpu.memory_space<smem>>) -> (i32, i32) {
    %c0_i32 = arith.constant 0 : i32
    %c0_i32_0 = arith.constant 0 : i32
    return %arg0, %c0_i32 : i32, i32
  }
}

</mosaic_0001>

<llo_original>
// kernel: _fused_mlp.1
$region0: #{_fused_mlp.1}
  #allocation0 [shape = 'u32[]', space=smem, size = 0x4, offset = 0x4, fixed_abs, tag = 'smem constant byte address 0x4 - core index']
  #allocation1 [shape = 'u32[144,128]{1,0:T(1,128)}', space=vmem, size = 0x12000, scoped, tag = 'internal scratch']
  #allocation2 [shape = 's32[1]{0}', space=sflag, size = 0x4, scoped, tag = 'scoped memory for _fused_mlp.1']
  #allocation3 [shape = 's32[1]{0:T(128)S(6)}', space=smem, size = 0x200, scoped, tag = 'prefetched SMEM operand 0']
  %s0 = inlined_call_operand.<no memory space> [shape: s32[1], index: 0, kind: input, shape index: {}]
  %s1 = inlined_call_operand.hbm [shape: f32[8,128], index: 1, kind: input, shape index: {}]
  %s2 = inlined_call_operand.hbm [shape: bf16[128,128], index: 2, kind: input, shape index: {}]
  %s3 = inlined_call_operand.vmem [shape: f32[1,128], index: 3, kind: input, shape index: {}]
  %s4 = inlined_call_operand.hbm [shape: bf16[128,128], index: 4, kind: input, shape index: {}]
  %s5 = inlined_call_operand.vmem [shape: f32[1,128], index: 5, kind: input, shape index: {}]
  %s6 = inlined_call_operand.hbm [shape: bf16[128,128], index: 6, kind: input, shape index: {}]
  %s7 = inlined_call_operand.vmem [shape: f32[1,128], index: 7, kind: input, shape index: {}]
  %s8 = inlined_call_operand.hbm [shape: f32[8,128], index: 8, kind: output, shape index: {}]
  %s9 = sld [smem:[#allocation0]]
  $region61: #{_fused_mlp.1} parent=0
    _
  %s11 = ssub.s32 1, %s9
  %s12 = scalar_select 0, %s11, %s9
  %13 = sst [smem:[#allocation3]] %s0
  $region1: #{_fused_mlp.1} parent=0
    #allocation4 [shape = 'u8[4096]{0}', space=vmem, size = 0x1000, scoped, tag = 'input window, operand 1, single buffered']
    #allocation5 [shape = 's32[1]{0}', space=sflag, size = 0x4, scoped, tag = 'scoped memory for _fused_mlp.1']
    #allocation6 [shape = 's32[1]{0}', space=sflag, size = 0x4, scoped, tag = 'scoped memory for _fused_mlp.1']
    #allocation7 [shape = 'u8[32768]{0}', space=vmem, size = 0x8000, scoped, tag = 'input window, operand 2, single buffered']
    #allocation8 [shape = 's32[1]{0}', space=sflag, size = 0x4, scoped, tag = 'scoped memory for _fused_mlp.1']
    #allocation9 [shape = 'u8[32768]{0}', space=vmem, size = 0x8000, scoped, tag = 'input window, operand 4, single buffered']
    #allocation10 [shape = 'u8[32768]{0}', space=vmem, size = 0x8000, scoped, tag = 'input window, operand 6, single buffered']
    #allocation11 [shape = 's32[1]{0}', space=sflag, size = 0x4, scoped, tag = 'scoped memory for _fused_mlp.1']
    #allocation12 [shape = 'u8[4096]{0}', space=vmem, size = 0x1000, scoped, tag = 'output window, operand 0, single buffered']
    %14 = vsyncpa [#allocation5], 0
    %15 = vsyncpa [#allocation8], 0
    %16 = vsyncpa [#allocation11], 0
    %17 = vsyncpa [#allocation6], 0
    // Predicated region
    $region2: #{_fused_mlp.1} parent=1 // pred_check
      _
    $region3: #{_fused_mlp.1} parent=1 // pred_check_branch
      %19 = sbr.rel (0) target = $region5
    $region4: #{_fused_mlp.1} parent=1 // pred_region
      %s21 = ssub.s32 128, 128
      %22 = vsyncadd [#allocation5], %s21
      %s24 = sshll.u32 [#allocation4], 4
      %s25 = int_to_ptr.vmem [resolvable:$true] %s24
      %27 = dma.hbm_to_vmem [thread:$0]  %s1, 128, %s25, [#allocation5]
    $region5: #{_fused_mlp.1} parent=1 // pred_fallthru
      _
    // Predicated region
    $region6: #{_fused_mlp.1} parent=1 // pred_check
      _
    $region7: #{_fused_mlp.1} parent=1 // pred_check_branch
      %29 = sbr.rel (0) target = $region9
    $region8: #{_fused_mlp.1} parent=1 // pred_region
      %s31 = ssub.s32 1024, 1024
      %32 = vsyncadd [#allocation8], %s31
      %s33 = sshll.u32 [#allocation7], 4
      %s34 = int_to_ptr.vmem [resolvable:$true] %s33
      %39 = dma.hbm_to_vmem [thread:$0]  %s2, 1024, %s34, [#allocation8], 64, 64, 4
    $region9: #{_fused_mlp.1} parent=1 // pred_fallthru
      _
    // Predicated region
    $region10: #{_fused_mlp.1} parent=1 // pred_check
      _
    $region11: #{_fused_mlp.1} parent=1 // pred_check_branch
      %41 = sbr.rel (0) target = $region13
    $region12: #{_fused_mlp.1} parent=1 // pred_region
      _
    $region13: #{_fused_mlp.1} parent=1 // pred_fallthru
      _
    // Predicated region
    $region14: #{_fused_mlp.1} parent=1 // pred_check
      _
    $region15: #{_fused_mlp.1} parent=1 // pred_check_branch
      %43 = sbr.rel (0) target = $region17
    $region16: #{_fused_mlp.1} parent=1 // pred_region
      %s45 = ssub.s32 1024, 1024
      %46 = vsyncadd [#allocation8], %s45
      %s47 = sshll.u32 [#allocation9], 4
      %s48 = int_to_ptr.vmem [resolvable:$true] %s47
      %53 = dma.hbm_to_vmem [thread:$0]  %s4, 1024, %s48, [#allocation8], 64, 64, 4
    $region17: #{_fused_mlp.1} parent=1 // pred_fallthru
      _
    // Predicated region
    $region18: #{_fused_mlp.1} parent=1 // pred_check
      _
    $region19: #{_fused_mlp.1} parent=1 // pred_check_branch
      %55 = sbr.rel (0) target = $region21
    $region20: #{_fused_mlp.1} parent=1 // pred_region
      _
    $region21: #{_fused_mlp.1} parent=1 // pred_fallthru
      _
    // Predicated region
    $region22: #{_fused_mlp.1} parent=1 // pred_check
      _
    $region23: #{_fused_mlp.1} parent=1 // pred_check_branch
      %57 = sbr.rel (0) target = $region25
    $region24: #{_fused_mlp.1} parent=1 // pred_region
      %s59 = ssub.s32 1024, 1024
      %60 = vsyncadd [#allocation11], %s59
      %s61 = sshll.u32 [#allocation10], 4
      %s62 = int_to_ptr.vmem [resolvable:$true] %s61
      %67 = dma.hbm_to_vmem [thread:$0]  %s6, 1024, %s62, [#allocation11], 64, 64, 4
    $region25: #{_fused_mlp.1} parent=1 // pred_fallthru
      _
    // Predicated region
    $region26: #{_fused_mlp.1} parent=1 // pred_check
      _
    $region27: #{_fused_mlp.1} parent=1 // pred_check_branch
      %69 = sbr.rel (0) target = $region29
    $region28: #{_fused_mlp.1} parent=1 // pred_region
      _
    $region29: #{_fused_mlp.1} parent=1 // pred_fallthru
      _
    // Predicated region
    $region30: #{_fused_mlp.1} parent=1 // pred_check
      _
    $region31: #{_fused_mlp.1} parent=1 // pred_check_branch
      %71 = sbr.rel (0) target = $region33
    $region32: #{_fused_mlp.1} parent=1 // pred_region
      %72 = dma.done [#allocation5], 128
    $region33: #{_fused_mlp.1} parent=1 // pred_fallthru
      _
    // Predicated region
    $region34: #{_fused_mlp.1} parent=1 // pred_check
      _
    $region35: #{_fused_mlp.1} parent=1 // pred_check_branch
      %74 = sbr.rel (0) target = $region37
    $region36: #{_fused_mlp.1} parent=1 // pred_region
      %75 = dma.done [#allocation8], 1024
    $region37: #{_fused_mlp.1} parent=1 // pred_fallthru
      _
    // Predicated region
    $region38: #{_fused_mlp.1} parent=1 // pred_check
      _
    $region39: #{_fused_mlp.1} parent=1 // pred_check_branch
      %77 = sbr.rel (0) target = $region41
    $region40: #{_fused_mlp.1} parent=1 // pred_region
      %78 = dma.done [#allocation8], 1024
    $region41: #{_fused_mlp.1} parent=1 // pred_fallthru
      _
    // Predicated region
    $region42: #{_fused_mlp.1} parent=1 // pred_check
      _
    $region43: #{_fused_mlp.1} parent=1 // pred_check_branch
      %80 = sbr.rel (0) target = $region45
    $region44: #{_fused_mlp.1} parent=1 // pred_region
      %81 = dma.done [#allocation11], 1024
    $region45: #{_fused_mlp.1} parent=1 // pred_fallthru
      _
    %v83 = vld [vmem:[#allocation4] sm:$0xff]
    %v84 = vpack.c.bf16 %v83, %v83
    %v85 = vld [vmem:[#allocation7] sm:$0xf]
    %v86 = vld [vmem:[#allocation7 + $0x4] sm:$0xf]
    %v87 = vld [vmem:[#allocation7 + $0x8] sm:$0xf]
    %v88 = vld [vmem:[#allocation7 + $0xc] sm:$0xf]
    %v89 = vld [vmem:[#allocation7 + $0x10] sm:$0xf]
    %v90 = vld [vmem:[#allocation7 + $0x14] sm:$0xf]
    %v91 = vld [vmem:[#allocation7 + $0x18] sm:$0xf]
    %v92 = vld [vmem:[#allocation7 + $0x1c] sm:$0xf]
    %v93 = vld [vmem:[#allocation7 + $0x20] sm:$0xf]
    %v94 = vld [vmem:[#allocation7 + $0x24] sm:$0xf]
    %v95 = vld [vmem:[#allocation7 + $0x28] sm:$0xf]
    %v96 = vld [vmem:[#allocation7 + $0x2c] sm:$0xf]
    %v97 = vld [vmem:[#allocation7 + $0x30] sm:$0xf]
    %v98 = vld [vmem:[#allocation7 + $0x34] sm:$0xf]
    %v99 = vld [vmem:[#allocation7 + $0x38] sm:$0xf]
    %v100 = vld [vmem:[#allocation7 + $0x3c] sm:$0xf]
    %v101 = vld [vmem:[%s3] sm:$0x1]
    %v103 = vlaneseq
    %v104 = vshrl.u32 %v103, 7
    %v105 = vsub.s32 0, %v104
    %v106 = vrot.slane %v101, %v105
    %v124 = vunpack.c.l.b16 %v85
    %v125 = vunpack.c.l.b16 %v86
    %v126 = vunpack.c.l.b16 %v87
    %v127 = vunpack.c.l.b16 %v88
    %v128 = vunpack.c.l.b16 %v89
    %v129 = vunpack.c.l.b16 %v90
    %v130 = vunpack.c.l.b16 %v91
    %v131 = vunpack.c.l.b16 %v92
    %v132 = vunpack.c.l.b16 %v93
    %v133 = vunpack.c.l.b16 %v94
    %v134 = vunpack.c.l.b16 %v95
    %v135 = vunpack.c.l.b16 %v96
    %v136 = vunpack.c.l.b16 %v97
    %v137 = vunpack.c.l.b16 %v98
    %v138 = vunpack.c.l.b16 %v99
    %v139 = vunpack.c.l.b16 %v100
    %v140 = vpack.c.b16 %v125, %v124
    %v141 = vpack.c.b16 %v127, %v126
    %v142 = vpack.c.b16 %v129, %v128
    %v143 = vpack.c.b16 %v131, %v130
    %v144 = vpack.c.b16 %v133, %v132
    %v145 = vpack.c.b16 %v135, %v134
    %v146 = vpack.c.b16 %v137, %v136
    %v147 = vpack.c.b16 %v139, %v138
    %156 = vmatprep.subr.bf16.mxu0 0
    %157 = vmatpush1.bf16.msra.mxu0 %v140
    %158 = vmatprep.subr.bf16.mxu0 0
    %159 = vmatpush1.bf16.msra.mxu0 %v141
    %160 = vmatprep.subr.bf16.mxu0 0
    %161 = vmatpush1.bf16.msra.mxu0 %v142
    %162 = vmatprep.subr.bf16.mxu0 0
    %163 = vmatpush1.bf16.msra.mxu0 %v143
    %164 = vmatprep.subr.bf16.mxu0 0
    %165 = vmatpush1.bf16.msra.mxu0 %v144
    %166 = vmatprep.subr.bf16.mxu0 0
    %167 = vmatpush1.bf16.msra.mxu0 %v145
    %168 = vmatprep.subr.bf16.mxu0 0
    %169 = vmatpush1.bf16.msra.mxu0 %v146
    %170 = vmatprep.subr.bf16.mxu0 0
    %171 = vmatpush1.bf16.msra.mxu0 %v147
    %172 = vmatprep.subr.bf16.mxu0 0
    %173 = vmatpush1.bf16.msra.mxu0 0
    %174 = vmatprep.subr.bf16.mxu0 0
    %175 = vmatpush1.bf16.msra.mxu0 0
    %176 = vmatprep.subr.bf16.mxu0 0
    %177 = vmatpush1.bf16.msra.mxu0 0
    %178 = vmatprep.subr.bf16.mxu0 0
    %179 = vmatpush1.bf16.msra.mxu0 0
    %180 = vmatprep.subr.bf16.mxu0 0
    %181 = vmatpush1.bf16.msra.mxu0 0
    %182 = vmatprep.subr.bf16.mxu0 0
    %183 = vmatpush1.bf16.msra.mxu0 0
    %184 = vmatprep.subr.bf16.mxu0 0
    %185 = vmatpush1.bf16.msra.mxu0 0
    %186 = vmatprep.subr.bf16.mxu0 0
    %187 = vmatpush1.bf16.msra.mxu0 0
    %188 = vmatprep.mubr.bf16.mxu0 0
    %189 = vmatmul.mubr.bf16.gmra.mrb[0].mxu0 %v84
    %v190 = vpop.f32.mrb[0].mxu0
    %v191 = vadd.f32 %v106, %v190
    %v192 = vpop.f32.mrb[0].mxu0
    %v193 = vpop.f32.mrb[0].mxu0
    %v194 = vpop.f32.mrb[0].mxu0
    %195 = vdwg.mxu0
    %v196 = vmax.f32 %v191, 0.0
    %v197 = vpack.c.bf16 %v196, %v196
    %v198 = vld [vmem:[%s5] sm:$0x1]
    %v200 = vlaneseq
    %v201 = vshrl.u32 %v200, 7
    %v202 = vsub.s32 0, %v201
    %v203 = vrot.slane %v198, %v202
    %s205 = sld [smem:[#allocation3]]
    // While loop
    $region46: #{_fused_mlp.1} parent=1 // loop_pre_header
      _
    $region47: #{_fused_mlp.1} parent=1 // loop_header
      %s207 = sphi 0, %s209
      %p208 = scmp.ge.s32.totalorder %s207, %s205
      %v212 = vphi %v197, %v318
    $region48: #{_fused_mlp.1} parent=1 // loop_header_branch
      %211 = sbr.rel (%p208) target = $region52
    $region49: #{_fused_mlp.1} parent=1 // loop_body
      %v213 = vld [vmem:[#allocation9] sm:$0xf]
      %v214 = vld [vmem:[#allocation9 + $0x4] sm:$0xf]
      %v215 = vld [vmem:[#allocation9 + $0x8] sm:$0xf]
      %v216 = vld [vmem:[#allocation9 + $0xc] sm:$0xf]
      %v217 = vld [vmem:[#allocation9 + $0x10] sm:$0xf]
      %v218 = vld [vmem:[#allocation9 + $0x14] sm:$0xf]
      %v219 = vld [vmem:[#allocation9 + $0x18] sm:$0xf]
      %v220 = vld [vmem:[#allocation9 + $0x1c] sm:$0xf]
      %v221 = vld [vmem:[#allocation9 + $0x20] sm:$0xf]
      %v222 = vld [vmem:[#allocation9 + $0x24] sm:$0xf]
      %v223 = vld [vmem:[#allocation9 + $0x28] sm:$0xf]
      %v224 = vld [vmem:[#allocation9 + $0x2c] sm:$0xf]
      %v225 = vld [vmem:[#allocation9 + $0x30] sm:$0xf]
      %v226 = vld [vmem:[#allocation9 + $0x34] sm:$0xf]
      %v227 = vld [vmem:[#allocation9 + $0x38] sm:$0xf]
      %v228 = vld [vmem:[#allocation9 + $0x3c] sm:$0xf]
      %v245 = vunpack.c.l.b16 %v213
      %v246 = vunpack.c.l.b16 %v214
      %v247 = vunpack.c.l.b16 %v215
      %v248 = vunpack.c.l.b16 %v216
      %v249 = vunpack.c.l.b16 %v217
      %v250 = vunpack.c.l.b16 %v218
      %v251 = vunpack.c.l.b16 %v219
      %v252 = vunpack.c.l.b16 %v220
      %v253 = vunpack.c.l.b16 %v221
      %v254 = vunpack.c.l.b16 %v222
      %v255 = vunpack.c.l.b16 %v223
      %v256 = vunpack.c.l.b16 %v224
      %v257 = vunpack.c.l.b16 %v225
      %v258 = vunpack.c.l.b16 %v226
      %v259 = vunpack.c.l.b16 %v227
      %v260 = vunpack.c.l.b16 %v228
      %v261 = vpack.c.b16 %v246, %v245
      %v262 = vpack.c.b16 %v248, %v247
      %v263 = vpack.c.b16 %v250, %v249
      %v264 = vpack.c.b16 %v252, %v251
      %v265 = vpack.c.b16 %v254, %v253
      %v266 = vpack.c.b16 %v256, %v255
      %v267 = vpack.c.b16 %v258, %v257
      %v268 = vpack.c.b16 %v260, %v259
      %277 = vmatprep.subr.bf16.mxu0 0
      %278 = vmatpush1.bf16.msra.mxu0 %v261
      %279 = vmatprep.subr.bf16.mxu0 0
      %280 = vmatpush1.bf16.msra.mxu0 %v262
      %281 = vmatprep.subr.bf16.mxu0 0
      %282 = vmatpush1.bf16.msra.mxu0 %v263
      %283 = vmatprep.subr.bf16.mxu0 0
      %284 = vmatpush1.bf16.msra.mxu0 %v264
      %285 = vmatprep.subr.bf16.mxu0 0
      %286 = vmatpush1.bf16.msra.mxu0 %v265
      %287 = vmatprep.subr.bf16.mxu0 0
      %288 = vmatpush1.bf16.msra.mxu0 %v266
      %289 = vmatprep.subr.bf16.mxu0 0
      %290 = vmatpush1.bf16.msra.mxu0 %v267
      %291 = vmatprep.subr.bf16.mxu0 0
      %292 = vmatpush1.bf16.msra.mxu0 %v268
      %293 = vmatprep.subr.bf16.mxu0 0
      %294 = vmatpush1.bf16.msra.mxu0 0
      %295 = vmatprep.subr.bf16.mxu0 0
      %296 = vmatpush1.bf16.msra.mxu0 0
      %297 = vmatprep.subr.bf16.mxu0 0
      %298 = vmatpush1.bf16.msra.mxu0 0
      %299 = vmatprep.subr.bf16.mxu0 0
      %300 = vmatpush1.bf16.msra.mxu0 0
      %301 = vmatprep.subr.bf16.mxu0 0
      %302 = vmatpush1.bf16.msra.mxu0 0
      %303 = vmatprep.subr.bf16.mxu0 0
      %304 = vmatpush1.bf16.msra.mxu0 0
      %305 = vmatprep.subr.bf16.mxu0 0
      %306 = vmatpush1.bf16.msra.mxu0 0
      %307 = vmatprep.subr.bf16.mxu0 0
      %308 = vmatpush1.bf16.msra.mxu0 0
      %309 = vmatprep.mubr.bf16.mxu0 0
      %310 = vmatmul.mubr.bf16.gmra.mrb[0].mxu0 %v212
      %v311 = vpop.f32.mrb[0].mxu0
      %v312 = vadd.f32 %v203, %v311
      %v313 = vpop.f32.mrb[0].mxu0
      %v314 = vpop.f32.mrb[0].mxu0
      %v315 = vpop.f32.mrb[0].mxu0
      %316 = vdwg.mxu0
      %v317 = vmax.f32 %v312, 0.0
      %v318 = vpack.c.bf16 %v317, %v317
    $region50: #{_fused_mlp.1} parent=1 // loop_footer
      %s209 = sadd.s32 %s207, 1
    $region51: #{_fused_mlp.1} parent=1 // loop_footer_branch
      %206 = sbr.rel target = $region47
    $region52: #{_fused_mlp.1} parent=1 // loop_exit
      _
    %v319 = vld [vmem:[#allocation10] sm:$0xf]
    %v320 = vld [vmem:[#allocation10 + $0x4] sm:$0xf]
    %v321 = vld [vmem:[#allocation10 + $0x8] sm:$0xf]
    %v322 = vld [vmem:[#allocation10 + $0xc] sm:$0xf]
    %v323 = vld [vmem:[#allocation10 + $0x10] sm:$0xf]
    %v324 = vld [vmem:[#allocation10 + $0x14] sm:$0xf]
    %v325 = vld [vmem:[#allocation10 + $0x18] sm:$0xf]
    %v326 = vld [vmem:[#allocation10 + $0x1c] sm:$0xf]
    %v327 = vld [vmem:[#allocation10 + $0x20] sm:$0xf]
    %v328 = vld [vmem:[#allocation10 + $0x24] sm:$0xf]
    %v329 = vld [vmem:[#allocation10 + $0x28] sm:$0xf]
    %v330 = vld [vmem:[#allocation10 + $0x2c] sm:$0xf]
    %v331 = vld [vmem:[#allocation10 + $0x30] sm:$0xf]
    %v332 = vld [vmem:[#allocation10 + $0x34] sm:$0xf]
    %v333 = vld [vmem:[#allocation10 + $0x38] sm:$0xf]
    %v334 = vld [vmem:[#allocation10 + $0x3c] sm:$0xf]
    %v335 = vld [vmem:[%s7] sm:$0x1]
    %v337 = vlaneseq
    %v338 = vshrl.u32 %v337, 7
    %v339 = vsub.s32 0, %v338
    %v340 = vrot.slane %v335, %v339
    %v358 = vunpack.c.l.b16 %v319
    %v359 = vunpack.c.l.b16 %v320
    %v360 = vunpack.c.l.b16 %v321
    %v361 = vunpack.c.l.b16 %v322
    %v362 = vunpack.c.l.b16 %v323
    %v363 = vunpack.c.l.b16 %v324
    %v364 = vunpack.c.l.b16 %v325
    %v365 = vunpack.c.l.b16 %v326
    %v366 = vunpack.c.l.b16 %v327
    %v367 = vunpack.c.l.b16 %v328
    %v368 = vunpack.c.l.b16 %v329
    %v369 = vunpack.c.l.b16 %v330
    %v370 = vunpack.c.l.b16 %v331
    %v371 = vunpack.c.l.b16 %v332
    %v372 = vunpack.c.l.b16 %v333
    %v373 = vunpack.c.l.b16 %v334
    %v374 = vpack.c.b16 %v359, %v358
    %v375 = vpack.c.b16 %v361, %v360
    %v376 = vpack.c.b16 %v363, %v362
    %v377 = vpack.c.b16 %v365, %v364
    %v378 = vpack.c.b16 %v367, %v366
    %v379 = vpack.c.b16 %v369, %v368
    %v380 = vpack.c.b16 %v371, %v370
    %v381 = vpack.c.b16 %v373, %v372
    %390 = vmatprep.subr.bf16.mxu0 0
    %391 = vmatpush1.bf16.msra.mxu0 %v374
    %392 = vmatprep.subr.bf16.mxu0 0
    %393 = vmatpush1.bf16.msra.mxu0 %v375
    %394 = vmatprep.subr.bf16.mxu0 0
    %395 = vmatpush1.bf16.msra.mxu0 %v376
    %396 = vmatprep.subr.bf16.mxu0 0
    %397 = vmatpush1.bf16.msra.mxu0 %v377
    %398 = vmatprep.subr.bf16.mxu0 0
    %399 = vmatpush1.bf16.msra.mxu0 %v378
    %400 = vmatprep.subr.bf16.mxu0 0
    %401 = vmatpush1.bf16.msra.mxu0 %v379
    %402 = vmatprep.subr.bf16.mxu0 0
    %403 = vmatpush1.bf16.msra.mxu0 %v380
    %404 = vmatprep.subr.bf16.mxu0 0
    %405 = vmatpush1.bf16.msra.mxu0 %v381
    %406 = vmatprep.subr.bf16.mxu0 0
    %407 = vmatpush1.bf16.msra.mxu0 0
    %408 = vmatprep.subr.bf16.mxu0 0
    %409 = vmatpush1.bf16.msra.mxu0 0
    %410 = vmatprep.subr.bf16.mxu0 0
    %411 = vmatpush1.bf16.msra.mxu0 0
    %412 = vmatprep.subr.bf16.mxu0 0
    %413 = vmatpush1.bf16.msra.mxu0 0
    %414 = vmatprep.subr.bf16.mxu0 0
    %415 = vmatpush1.bf16.msra.mxu0 0
    %416 = vmatprep.subr.bf16.mxu0 0
    %417 = vmatpush1.bf16.msra.mxu0 0
    %418 = vmatprep.subr.bf16.mxu0 0
    %419 = vmatpush1.bf16.msra.mxu0 0
    %420 = vmatprep.subr.bf16.mxu0 0
    %421 = vmatpush1.bf16.msra.mxu0 0
    %422 = vmatprep.mubr.bf16.mxu0 0
    %423 = vmatmul.mubr.bf16.gmra.mrb[0].mxu0 %v212
    %v424 = vpop.f32.mrb[0].mxu0
    %v425 = vadd.f32 %v340, %v424
    %v426 = vpop.f32.mrb[0].mxu0
    %v427 = vpop.f32.mrb[0].mxu0
    %v428 = vpop.f32.mrb[0].mxu0
    %429 = vdwg.mxu0
    %430 = vst [vmem:[#allocation12] sm:$0xff] %v425
    // Predicated region
    $region53: #{_fused_mlp.1} parent=1 // pred_check
      _
    $region54: #{_fused_mlp.1} parent=1 // pred_check_branch
      %432 = sbr.rel (0) target = $region56
    $region55: #{_fused_mlp.1} parent=1 // pred_region
      %s434 = ssub.s32 128, 128
      %435 = vsyncadd [#allocation6], %s434
      %s437 = sshll.u32 [#allocation12], 4
      %s438 = int_to_ptr.vmem [resolvable:$true] %s437
      %440 = dma.vmem_to_hbm [thread:$0]  %s438, 128, %s8, [#allocation6]
    $region56: #{_fused_mlp.1} parent=1 // pred_fallthru
      _
    // Predicated region
    $region57: #{_fused_mlp.1} parent=1 // pred_check
      _
    $region58: #{_fused_mlp.1} parent=1 // pred_check_branch
      %442 = sbr.rel (0) target = $region60
    $region59: #{_fused_mlp.1} parent=1 // pred_region
      %443 = dma.done [#allocation6], 128
    $region60: #{_fused_mlp.1} parent=1 // pred_fallthru
      _
    %444 = vsyncpa [#allocation5], 1
    %445 = vsyncpa [#allocation8], 1
    %446 = vsyncpa [#allocation11], 1
    %447 = vsyncpa [#allocation6], 1

</llo_original>
